<compile_context>
chip_gen: v7x
topology: tpu7x:2x2x1
jax: 0.10.0
libtpu: 0.0.40
codegen_flags: <defaults>
</compile_context>

<pallas_src>
import functools

import jax
import jax.numpy as jnp
from jax import lax
from jax.experimental import pallas as pl
from jax.experimental.pallas import tpu as pltpu

NUM_CLASSES = 4
_LANES = 128


def _round_up(x, m):
    return ((x + m - 1) // m) * m


def _ftl_sums_kernel(preds_ref, tgt_ref, tp_ref, sp_ref, cnt_ref, *,
                     n_valid, tile_n, cps):
    """Accumulate per-(batch, class) partial sums over one N-chunk.

    preds_ref: (B, C, tile_n) logits (f32 or bf16)
    tgt_ref:   (B, tile_n) integer labels
    tp_ref, sp_ref, cnt_ref: (B, C, 128) lane-folded f32 accumulators,
      grid-resident along the inner ("arbitrary") grid axis.
    """
    p_id = pl.program_id(0)          # parallel slice (megacore on v7x)
    j = pl.program_id(1)             # chunk index within this slice (reduction)
    g = p_id * cps + j               # global chunk index

    n_chunks = (n_valid + tile_n - 1) // tile_n      # static
    last = n_chunks - 1                              # static
    rem = n_valid - last * tile_n                    # static, in (0, tile_n]

    # Zero the resident accumulators at the start of every parallel slice.
    @pl.when(j == 0)
    def _init():
        tp_ref[...] = jnp.zeros_like(tp_ref)
        sp_ref[...] = jnp.zeros_like(sp_ref)
        cnt_ref[...] = jnp.zeros_like(cnt_ref)

    def accumulate(valid_lanes):
        # valid_lanes is a *static* Python int in (0, tile_n].
        x = preds_ref[...].astype(jnp.float32)        # (B, C, T)
        t = tgt_ref[...].astype(jnp.int32)            # (B, T)
        B, C, T = x.shape

        # Numerically stable softmax over the class axis (== dim=1 in PyTorch).
        m = jnp.max(x, axis=1, keepdims=True)
        e = jnp.exp(x - m)
        denom = jnp.sum(e, axis=1, keepdims=True)
        prob = e * pl.reciprocal(denom, approx=True)  # (B, C, T)

        class_ids = lax.broadcasted_iota(jnp.int32, (B, C, _LANES), 1)

        tp = tp_ref[...]
        sp = sp_ref[...]
        cnt = cnt_ref[...]
        n_groups = (valid_lanes + _LANES - 1) // _LANES
        for i in range(n_groups):
            lo = i * _LANES
            p_i = prob[:, :, lo:lo + _LANES]          # (B, C, 128), lane-aligned
            t_i = t[:, lo:lo + _LANES]                # (B, 128)
            match = class_ids == t_i[:, None, :]
            if lo + _LANES > valid_lanes:
                # Single ragged group: static lane mask; also zero p so any
                # garbage (NaN/inf) in out-of-bounds lanes cannot leak in.
                lane_ok = lax.broadcasted_iota(
                    jnp.int32, (B, C, _LANES), 2) < (valid_lanes - lo)
                match = jnp.logical_and(match, lane_ok)
                p_i = jnp.where(lane_ok, p_i, 0.0)
            onehot = jnp.where(match, 1.0, 0.0)
            tp = tp + p_i * onehot
            sp = sp + p_i
            cnt = cnt + onehot
        tp_ref[...] = tp
        sp_ref[...] = sp
        cnt_ref[...] = cnt

    if rem == tile_n:
        # No ragged tail; only guard against fully out-of-range chunks
        # (when n_chunks does not divide evenly across the parallel slices).
        @pl.when(g <= last)
        def _full():
            accumulate(tile_n)
    else:
        @pl.when(g < last)
        def _full():
            accumulate(tile_n)

        @pl.when(g == last)
        def _ragged():
            accumulate(rem)


def focal_tversky_loss(preds, targets, alpha=0.7, beta=0.3, gamma=0.75,
                       smooth=1e-6, max_tile_n=8192, num_parallel=2):
    """preds: (B, C, D, H, W) float logits (f32 or bf16); targets: (B, D, H, W) ints."""
    B, C, D, H, W = preds.shape
    assert C == NUM_CLASSES
    N = D * H * W

    preds_f = preds.reshape(B, C, N)       # keep native dtype (bf16 stays bf16)
    tgt_f = targets.reshape(B, N)          # keep native integer dtype

    # Large lane tile (multiple of 128), capped at what's actually needed.
    tile_n = max(_LANES, min(_round_up(N, _LANES), _round_up(int(max_tile_n), _LANES)))
    n_chunks = pl.cdiv(N, tile_n)
    P = max(1, int(num_parallel))
    cps = pl.cdiv(n_chunks, P)             # chunks per parallel slice
    last = n_chunks - 1

    kernel = functools.partial(_ftl_sums_kernel, n_valid=N, tile_n=tile_n, cps=cps)

    preds_idx = lambda p, j: (0, 0, jnp.minimum(p * cps + j, last))
    tgt_idx = lambda p, j: (0, jnp.minimum(p * cps + j, last))
    out_idx = lambda p, j: (p, 0, 0, 0)

    tp_p, sp_p, cnt_p = pl.pallas_call(
        kernel,
        out_shape=[jax.ShapeDtypeStruct((P, B, C, _LANES), jnp.float32)] * 3,
        grid_spec=pltpu.PrefetchScalarGridSpec(
            num_scalar_prefetch=0,
            grid=(P, cps),
            in_specs=[
                pl.BlockSpec((B, C, tile_n), preds_idx),
                pl.BlockSpec((B, tile_n), tgt_idx),
            ],
            out_specs=[pl.BlockSpec((None, B, C, _LANES), out_idx)] * 3,
        ),
        compiler_params=pltpu.CompilerParams(
            dimension_semantics=("parallel", "arbitrary")),
    )(preds_f, tgt_f)

    # Tiny (B, C) epilogue in plain JAX.
    tp = jnp.sum(tp_p, axis=(0, 3))
    sum_p = jnp.sum(sp_p, axis=(0, 3))
    count = jnp.sum(cnt_p, axis=(0, 3))
    fp = sum_p - tp
    fn = count - tp
    tversky = (tp + smooth) / (tp + alpha * fn + beta * fp + smooth)
    return jnp.mean((1.0 - tversky) ** gamma)


def _reference_loss(preds, targets, alpha=0.7, beta=0.3, gamma=0.75, smooth=1e-6):
    p = jax.nn.softmax(preds.astype(jnp.float32), axis=1)
    oh = jax.nn.one_hot(targets, NUM_CLASSES, axis=1, dtype=jnp.float32)
    dims = (2, 3, 4)
    tp = jnp.sum(p * oh, axis=dims)
    fp = jnp.sum(p * (1.0 - oh), axis=dims)
    fn = jnp.sum((1.0 - p) * oh, axis=dims)
    tv = (tp + smooth) / (tp + alpha * fn + beta * fp + smooth)
    return jnp.mean((1.0 - tv) ** gamma)


if __name__ == "__main__":
    key = jax.random.PRNGKey(0)
    k1, k2, k3, k4 = jax.random.split(key, 4)

    # Primary small shape (lane-aligned N = 512).
    B, C, D, H, W = 2, NUM_CLASSES, 8, 8, 8
    preds = jax.random.normal(k1, (B, C, D, H, W), dtype=jnp.float32)
    targets = jax.random.randint(k2, (B, D, H, W), 0, NUM_CLASSES, dtype=jnp.int32)
    loss = jax.block_until_ready(focal_tversky_loss(preds, targets))
    ref = jax.block_until_ready(_reference_loss(preds, targets))
    assert jnp.allclose(loss, ref, atol=2e-3, rtol=2e-3), (loss, ref)

    # Ragged shape (N = 343 with a 256-lane tile) exercises multi-chunk +
    # parallel slices + partial trailing block + the static tail mask.
    D2, H2, W2 = 7, 7, 7
    preds2 = jax.random.normal(k3, (B, C, D2, H2, W2), dtype=jnp.float32)
    targets2 = jax.random.randint(k4, (B, D2, H2, W2), 0, NUM_CLASSES, dtype=jnp.int32)
    loss2 = jax.block_until_ready(focal_tversky_loss(preds2, targets2, max_tile_n=256))
    ref2 = jax.block_until_ready(_reference_loss(preds2, targets2))
    assert jnp.allclose(loss2, ref2, atol=2e-3, rtol=2e-3), (loss2, ref2)

    print("KERNEL_OK")
</pallas_src>

<mosaic_0001>
module attributes {stable_mosaic.version = 11 : i64} {
  func.func @_ftl_sums_kernel(%arg0: i32, %arg1: i32, %arg2: memref<2x4x512xf32, #tpu.memory_space<vmem>>, %arg3: memref<2x512xi32, #tpu.memory_space<vmem>>, %arg4: memref<1x2x4x128xf32, #tpu.memory_space<vmem>>, %arg5: memref<1x2x4x128xf32, #tpu.memory_space<vmem>>, %arg6: memref<1x2x4x128xf32, #tpu.memory_space<vmem>>) attributes {dimension_semantics = [#tpu.dimension_semantics<parallel>, #tpu.dimension_semantics<arbitrary>], iteration_bounds = array<i64: 2, 1>, scalar_prefetch = 0 : i64, scratch_operands = 0 : i64, tpu.core_type = #tpu.core_type<tc>, window_params = [{transform_indices = @transform_0, window_bounds = array<i64: 2, 4, 512>}, {transform_indices = @transform_1, window_bounds = array<i64: 2, 512>}, {transform_indices = @transform_2, window_bounds = array<i64: 1, 2, 4, 128>}, {transform_indices = @transform_3, window_bounds = array<i64: 1, 2, 4, 128>}, {transform_indices = @transform_4, window_bounds = array<i64: 1, 2, 4, 128>}]} {
    %c1_i32 = arith.constant 1 : i32
    %0 = arith.muli %arg0, %c1_i32 : i32
    %1 = arith.addi %0, %arg1 : i32
    %c0_i32 = arith.constant 0 : i32
    %2 = arith.cmpi eq, %arg1, %c0_i32 : i32
    %3 = arith.extui %2 : i1 to i32
    %c0_i32_0 = arith.constant 0 : i32
    %4 = arith.cmpi ne, %3, %c0_i32_0 : i32
    scf.if %4 {
      %cst = arith.constant 0.000000e+00 : f32
      %8 = vector.broadcast %cst : f32 to vector<2x4x128xf32>
      %c0 = arith.constant 0 : index
      %c0_3 = arith.constant 0 : index
      %c0_4 = arith.constant 0 : index
      %c0_5 = arith.constant 0 : index
      %9 = vector.load %arg4[%c0, %c0_3, %c0_4, %c0_5] : memref<1x2x4x128xf32, #tpu.memory_space<vmem>>, vector<1x2x4x128xf32>
      %10 = vector.shape_cast %9 : vector<1x2x4x128xf32> to vector<2x4x128xf32>
      %11 = vector.shape_cast %8 : vector<2x4x128xf32> to vector<1x2x4x128xf32>
      tpu.vector_store %arg4[%c0, %c0_3, %c0_4, %c0_5], %11 {strides = array<i32>} : memref<1x2x4x128xf32, #tpu.memory_space<vmem>>, vector<1x2x4x128xf32>,
      %cst_6 = arith.constant 0.000000e+00 : f32
      %12 = vector.broadcast %cst_6 : f32 to vector<2x4x128xf32>
      %c0_7 = arith.constant 0 : index
      %c0_8 = arith.constant 0 : index
      %c0_9 = arith.constant 0 : index
      %c0_10 = arith.constant 0 : index
      %13 = vector.load %arg5[%c0_7, %c0_8, %c0_9, %c0_10] : memref<1x2x4x128xf32, #tpu.memory_space<vmem>>, vector<1x2x4x128xf32>
      %14 = vector.shape_cast %13 : vector<1x2x4x128xf32> to vector<2x4x128xf32>
      %15 = vector.shape_cast %12 : vector<2x4x128xf32> to vector<1x2x4x128xf32>
      tpu.vector_store %arg5[%c0_7, %c0_8, %c0_9, %c0_10], %15 {strides = array<i32>} : memref<1x2x4x128xf32, #tpu.memory_space<vmem>>, vector<1x2x4x128xf32>,
      %cst_11 = arith.constant 0.000000e+00 : f32
      %16 = vector.broadcast %cst_11 : f32 to vector<2x4x128xf32>
      %c0_12 = arith.constant 0 : index
      %c0_13 = arith.constant 0 : index
      %c0_14 = arith.constant 0 : index
      %c0_15 = arith.constant 0 : index
      %17 = vector.load %arg6[%c0_12, %c0_13, %c0_14, %c0_15] : memref<1x2x4x128xf32, #tpu.memory_space<vmem>>, vector<1x2x4x128xf32>
      %18 = vector.shape_cast %17 : vector<1x2x4x128xf32> to vector<2x4x128xf32>
      %19 = vector.shape_cast %16 : vector<2x4x128xf32> to vector<1x2x4x128xf32>
      tpu.vector_store %arg6[%c0_12, %c0_13, %c0_14, %c0_15], %19 {strides = array<i32>} : memref<1x2x4x128xf32, #tpu.memory_space<vmem>>, vector<1x2x4x128xf32>,
    } else {
    }
    %c0_i32_1 = arith.constant 0 : i32
    %5 = arith.cmpi sle, %1, %c0_i32_1 : i32
    %6 = arith.extui %5 : i1 to i32
    %c0_i32_2 = arith.constant 0 : i32
    %7 = arith.cmpi ne, %6, %c0_i32_2 : i32
    scf.if %7 {
      %c0 = arith.constant 0 : index
      %c0_3 = arith.constant 0 : index
      %c0_4 = arith.constant 0 : index
      %8 = vector.load %arg2[%c0, %c0_3, %c0_4] : memref<2x4x512xf32, #tpu.memory_space<vmem>>, vector<2x4x512xf32>
      %c0_5 = arith.constant 0 : index
      %c0_6 = arith.constant 0 : index
      %9 = vector.load %arg3[%c0_5, %c0_6] : memref<2x512xi32, #tpu.memory_space<vmem>>, vector<2x512xi32>
      %cst = arith.constant dense<0xFF800000> : vector<2x512xf32>
      %10 = vector.multi_reduction <maximumf>, %8, %cst [1] : vector<2x4x512xf32> to vector<2x512xf32>
      %11 = vector.shape_cast %10 : vector<2x512xf32> to vector<2x1x512xf32>
      %12 = vector.broadcast %11 : vector<2x1x512xf32> to vector<2x4x512xf32>
      %13 = arith.subf %8, %12 : vector<2x4x512xf32>
      %14 = math.exp %13 : vector<2x4x512xf32>
      %cst_7 = arith.constant dense<0.000000e+00> : vector<2x512xf32>
      %15 = vector.multi_reduction <add>, %14, %cst_7 [1] : vector<2x4x512xf32> to vector<2x512xf32>
      %16 = vector.shape_cast %15 : vector<2x512xf32> to vector<2x1x512xf32>
      %17 = tpu.reciprocal %16 {approx = true} : vector<2x1x512xf32> -> vector<2x1x512xf32>
      %18 = vector.broadcast %17 : vector<2x1x512xf32> to vector<2x4x512xf32>
      %19 = arith.mulf %14, %18 : vector<2x4x512xf32>
      %20 = tpu.iota {dimensions = array<i32: 1>} : vector<2x4x128xi32>
      %c0_8 = arith.constant 0 : index
      %c0_9 = arith.constant 0 : index
      %c0_10 = arith.constant 0 : index
      %c0_11 = arith.constant 0 : index
      %21 = vector.load %arg4[%c0_8, %c0_9, %c0_10, %c0_11] : memref<1x2x4x128xf32, #tpu.memory_space<vmem>>, vector<1x2x4x128xf32>
      %22 = vector.shape_cast %21 : vector<1x2x4x128xf32> to vector<2x4x128xf32>
      %c0_12 = arith.constant 0 : index
      %c0_13 = arith.constant 0 : index
      %c0_14 = arith.constant 0 : index
      %c0_15 = arith.constant 0 : index
      %23 = vector.load %arg5[%c0_12, %c0_13, %c0_14, %c0_15] : memref<1x2x4x128xf32, #tpu.memory_space<vmem>>, vector<1x2x4x128xf32>
      %24 = vector.shape_cast %23 : vector<1x2x4x128xf32> to vector<2x4x128xf32>
      %c0_16 = arith.constant 0 : index
      %c0_17 = arith.constant 0 : index
      %c0_18 = arith.constant 0 : index
      %c0_19 = arith.constant 0 : index
      %25 = vector.load %arg6[%c0_16, %c0_17, %c0_18, %c0_19] : memref<1x2x4x128xf32, #tpu.memory_space<vmem>>, vector<1x2x4x128xf32>
      %26 = vector.shape_cast %25 : vector<1x2x4x128xf32> to vector<2x4x128xf32>
      %27 = vector.extract_strided_slice %19 {offsets = [0, 0, 0], sizes = [2, 4, 128], strides = [1, 1, 1]} : vector<2x4x512xf32> to vector<2x4x128xf32>
      %28 = vector.extract_strided_slice %9 {offsets = [0, 0], sizes = [2, 128], strides = [1, 1]} : vector<2x512xi32> to vector<2x128xi32>
      %29 = vector.shape_cast %28 : vector<2x128xi32> to vector<2x1x128xi32>
      %30 = vector.broadcast %29 : vector<2x1x128xi32> to vector<2x4x128xi32>
      %31 = arith.cmpi eq, %20, %30 : vector<2x4x128xi32>
      %cst_20 = arith.constant 1.000000e+00 : f32
      %cst_21 = arith.constant 0.000000e+00 : f32
      %32 = vector.broadcast %cst_20 : f32 to vector<2x4x128xf32>
      %33 = vector.broadcast %cst_21 : f32 to vector<2x4x128xf32>
      %34 = arith.select %31, %32, %33 : vector<2x4x128xi1>, vector<2x4x128xf32>
      %35 = arith.mulf %27, %34 : vector<2x4x128xf32>
      %36 = arith.addf %22, %35 : vector<2x4x128xf32>
      %37 = arith.addf %24, %27 : vector<2x4x128xf32>
      %38 = arith.addf %26, %34 : vector<2x4x128xf32>
      %39 = vector.extract_strided_slice %19 {offsets = [0, 0, 128], sizes = [2, 4, 128], strides = [1, 1, 1]} : vector<2x4x512xf32> to vector<2x4x128xf32>
      %40 = vector.extract_strided_slice %9 {offsets = [0, 128], sizes = [2, 128], strides = [1, 1]} : vector<2x512xi32> to vector<2x128xi32>
      %41 = vector.shape_cast %40 : vector<2x128xi32> to vector<2x1x128xi32>
      %42 = vector.broadcast %41 : vector<2x1x128xi32> to vector<2x4x128xi32>
      %43 = arith.cmpi eq, %20, %42 : vector<2x4x128xi32>
      %cst_22 = arith.constant 1.000000e+00 : f32
      %cst_23 = arith.constant 0.000000e+00 : f32
      %44 = vector.broadcast %cst_22 : f32 to vector<2x4x128xf32>
      %45 = vector.broadcast %cst_23 : f32 to vector<2x4x128xf32>
      %46 = arith.select %43, %44, %45 : vector<2x4x128xi1>, vector<2x4x128xf32>
      %47 = arith.mulf %39, %46 : vector<2x4x128xf32>
      %48 = arith.addf %36, %47 : vector<2x4x128xf32>
      %49 = arith.addf %37, %39 : vector<2x4x128xf32>
      %50 = arith.addf %38, %46 : vector<2x4x128xf32>
      %51 = vector.extract_strided_slice %19 {offsets = [0, 0, 256], sizes = [2, 4, 128], strides = [1, 1, 1]} : vector<2x4x512xf32> to vector<2x4x128xf32>
      %52 = vector.extract_strided_slice %9 {offsets = [0, 256], sizes = [2, 128], strides = [1, 1]} : vector<2x512xi32> to vector<2x128xi32>
      %53 = vector.shape_cast %52 : vector<2x128xi32> to vector<2x1x128xi32>
      %54 = vector.broadcast %53 : vector<2x1x128xi32> to vector<2x4x128xi32>
      %55 = arith.cmpi eq, %20, %54 : vector<2x4x128xi32>
      %cst_24 = arith.constant 1.000000e+00 : f32
      %cst_25 = arith.constant 0.000000e+00 : f32
      %56 = vector.broadcast %cst_24 : f32 to vector<2x4x128xf32>
      %57 = vector.broadcast %cst_25 : f32 to vector<2x4x128xf32>
      %58 = arith.select %55, %56, %57 : vector<2x4x128xi1>, vector<2x4x128xf32>
      %59 = arith.mulf %51, %58 : vector<2x4x128xf32>
      %60 = arith.addf %48, %59 : vector<2x4x128xf32>
      %61 = arith.addf %49, %51 : vector<2x4x128xf32>
      %62 = arith.addf %50, %58 : vector<2x4x128xf32>
      %63 = vector.extract_strided_slice %19 {offsets = [0, 0, 384], sizes = [2, 4, 128], strides = [1, 1, 1]} : vector<2x4x512xf32> to vector<2x4x128xf32>
      %64 = vector.extract_strided_slice %9 {offsets = [0, 384], sizes = [2, 128], strides = [1, 1]} : vector<2x512xi32> to vector<2x128xi32>
      %65 = vector.shape_cast %64 : vector<2x128xi32> to vector<2x1x128xi32>
      %66 = vector.broadcast %65 : vector<2x1x128xi32> to vector<2x4x128xi32>
      %67 = arith.cmpi eq, %20, %66 : vector<2x4x128xi32>
      %cst_26 = arith.constant 1.000000e+00 : f32
      %cst_27 = arith.constant 0.000000e+00 : f32
      %68 = vector.broadcast %cst_26 : f32 to vector<2x4x128xf32>
      %69 = vector.broadcast %cst_27 : f32 to vector<2x4x128xf32>
      %70 = arith.select %67, %68, %69 : vector<2x4x128xi1>, vector<2x4x128xf32>
      %71 = arith.mulf %63, %70 : vector<2x4x128xf32>
      %72 = arith.addf %60, %71 : vector<2x4x128xf32>
      %73 = arith.addf %61, %63 : vector<2x4x128xf32>
      %74 = arith.addf %62, %70 : vector<2x4x128xf32>
      %c0_28 = arith.constant 0 : index
      %c0_29 = arith.constant 0 : index
      %c0_30 = arith.constant 0 : index
      %c0_31 = arith.constant 0 : index
      %75 = vector.load %arg4[%c0_28, %c0_29, %c0_30, %c0_31] : memref<1x2x4x128xf32, #tpu.memory_space<vmem>>, vector<1x2x4x128xf32>
      %76 = vector.shape_cast %75 : vector<1x2x4x128xf32> to vector<2x4x128xf32>
      %77 = vector.shape_cast %72 : vector<2x4x128xf32> to vector<1x2x4x128xf32>
      tpu.vector_store %arg4[%c0_28, %c0_29, %c0_30, %c0_31], %77 {strides = array<i32>} : memref<1x2x4x128xf32, #tpu.memory_space<vmem>>, vector<1x2x4x128xf32>,
      %c0_32 = arith.constant 0 : index
      %c0_33 = arith.constant 0 : index
      %c0_34 = arith.constant 0 : index
      %c0_35 = arith.constant 0 : index
      %78 = vector.load %arg5[%c0_32, %c0_33, %c0_34, %c0_35] : memref<1x2x4x128xf32, #tpu.memory_space<vmem>>, vector<1x2x4x128xf32>
      %79 = vector.shape_cast %78 : vector<1x2x4x128xf32> to vector<2x4x128xf32>
      %80 = vector.shape_cast %73 : vector<2x4x128xf32> to vector<1x2x4x128xf32>
      tpu.vector_store %arg5[%c0_32, %c0_33, %c0_34, %c0_35], %80 {strides = array<i32>} : memref<1x2x4x128xf32, #tpu.memory_space<vmem>>, vector<1x2x4x128xf32>,
      %c0_36 = arith.constant 0 : index
      %c0_37 = arith.constant 0 : index
      %c0_38 = arith.constant 0 : index
      %c0_39 = arith.constant 0 : index
      %81 = vector.load %arg6[%c0_36, %c0_37, %c0_38, %c0_39] : memref<1x2x4x128xf32, #tpu.memory_space<vmem>>, vector<1x2x4x128xf32>
      %82 = vector.shape_cast %81 : vector<1x2x4x128xf32> to vector<2x4x128xf32>
      %83 = vector.shape_cast %74 : vector<2x4x128xf32> to vector<1x2x4x128xf32>
      tpu.vector_store %arg6[%c0_36, %c0_37, %c0_38, %c0_39], %83 {strides = array<i32>} : memref<1x2x4x128xf32, #tpu.memory_space<vmem>>, vector<1x2x4x128xf32>,
    } else {
    }
    return
  }
  func.func @transform_0(%arg0: i32, %arg1: i32) -> (i32, i32, i32) {
    %c1_i32 = arith.constant 1 : i32
    %0 = arith.muli %arg0, %c1_i32 : i32
    %1 = arith.addi %0, %arg1 : i32
    %c0_i32 = arith.constant 0 : i32
    %2 = arith.minsi %1, %c0_i32 : i32
    %c0_i32_0 = arith.constant 0 : i32
    %c0_i32_1 = arith.constant 0 : i32
    %c0_i32_2 = arith.constant 0 : i32
    return %c0_i32_0, %c0_i32_1, %2 : i32, i32, i32
  }
  func.func @transform_1(%arg0: i32, %arg1: i32) -> (i32, i32) {
    %c1_i32 = arith.constant 1 : i32
    %0 = arith.muli %arg0, %c1_i32 : i32
    %1 = arith.addi %0, %arg1 : i32
    %c0_i32 = arith.constant 0 : i32
    %2 = arith.minsi %1, %c0_i32 : i32
    %c0_i32_0 = arith.constant 0 : i32
    %c0_i32_1 = arith.constant 0 : i32
    return %c0_i32_0, %2 : i32, i32
  }
  func.func @transform_2(%arg0: i32, %arg1: i32) -> (i32, i32, i32, i32) {
    %c0_i32 = arith.constant 0 : i32
    %c0_i32_0 = arith.constant 0 : i32
    %c0_i32_1 = arith.constant 0 : i32
    %c0_i32_2 = arith.constant 0 : i32
    return %arg0, %c0_i32, %c0_i32_0, %c0_i32_1 : i32, i32, i32, i32
  }
  func.func @transform_3(%arg0: i32, %arg1: i32) -> (i32, i32, i32, i32) {
    %c0_i32 = arith.constant 0 : i32
    %c0_i32_0 = arith.constant 0 : i32
    %c0_i32_1 = arith.constant 0 : i32
    %c0_i32_2 = arith.constant 0 : i32
    return %arg0, %c0_i32, %c0_i32_0, %c0_i32_1 : i32, i32, i32, i32
  }
  func.func @transform_4(%arg0: i32, %arg1: i32) -> (i32, i32, i32, i32) {
    %c0_i32 = arith.constant 0 : i32
    %c0_i32_0 = arith.constant 0 : i32
    %c0_i32_1 = arith.constant 0 : i32
    %c0_i32_2 = arith.constant 0 : i32
    return %arg0, %c0_i32, %c0_i32_0, %c0_i32_1 : i32, i32, i32, i32
  }
}

</mosaic_0001>

<llo_original>
// kernel: tpu_custom_call.1
$region0: #{tpu_custom_call.1}
  #allocation0 [shape = 'u32[]', space=smem, size = 0x4, offset = 0x4, fixed_abs, tag = 'smem constant byte address 0x4 - core index']
  #allocation1 [shape = 'u32[144,128]{1,0:T(1,128)}', space=vmem, size = 0x12000, scoped, tag = 'internal scratch']
  %s0 = inlined_call_operand.hbm [shape: f32[2,4,512], index: 0, kind: input, shape index: {}]
  %s1 = inlined_call_operand.hbm [shape: s32[2,512], index: 1, kind: input, shape index: {}]
  %s2 = inlined_call_operand.hbm [shape: f32[2,2,4,128], index: 2, kind: output, shape index: {0}]
  %s3 = inlined_call_operand.hbm [shape: f32[2,2,4,128], index: 3, kind: output, shape index: {1}]
  %s4 = inlined_call_operand.hbm [shape: f32[2,2,4,128], index: 4, kind: output, shape index: {2}]
  %5 = xla_tuple %s2, %s3, %s4
  %s6 = sld [smem:[#allocation0]]
  $region73: #{tpu_custom_call.1} parent=0
    _
  %s8 = ssub.s32 1, %s6
  %s9 = scalar_select 0, %s8, %s6
  $region1: #{tpu_custom_call.1} parent=0
    #allocation2 [shape = 'u8[32768]{0}', space=vmem, size = 0x8000, scoped, tag = 'input window, operand 0']
    #allocation3 [shape = 's32[2]{0}', space=sflag, size = 0x8, scoped, tag = 'scoped memory for tpu_custom_call.1']
    #allocation4 [shape = 's32[2]{0}', space=sflag, size = 0x8, scoped, tag = 'scoped memory for tpu_custom_call.1']
    #allocation5 [shape = 'u8[8192]{0}', space=vmem, size = 0x2000, scoped, tag = 'input window, operand 1']
    #allocation6 [shape = 's32[2]{0}', space=sflag, size = 0x8, scoped, tag = 'scoped memory for tpu_custom_call.1']
    #allocation7 [shape = 'u8[8192]{0}', space=vmem, size = 0x2000, scoped, tag = 'output window, operand 0']
    #allocation8 [shape = 'u8[8192]{0}', space=vmem, size = 0x2000, scoped, tag = 'output window, operand 1']
    #allocation9 [shape = 's32[2]{0}', space=sflag, size = 0x8, scoped, tag = 'scoped memory for tpu_custom_call.1']
    #allocation10 [shape = 'u8[8192]{0}', space=vmem, size = 0x2000, scoped, tag = 'output window, operand 2']
    %10 = vsyncpa [#allocation3], 0
    %s11 = scalar_lea.sflag [#allocation3], 1
    %12 = vsyncpa %s11, 0
    %13 = vsyncpa [#allocation6], 0
    %s14 = scalar_lea.sflag [#allocation6], 1
    %15 = vsyncpa %s14, 0
    %16 = vsyncpa [#allocation4], 0
    %s17 = scalar_lea.sflag [#allocation4], 1
    %18 = vsyncpa %s17, 0
    %19 = vsyncpa [#allocation9], 0
    %s20 = scalar_lea.sflag [#allocation9], 1
    %21 = vsyncpa %s20, 0
    loop: start=0, step=1, limit=4
    $region2: #{tpu_custom_call.1} parent=1 // loop_pre_header
      _
    $region3: #{tpu_custom_call.1} parent=1 // loop_header
      %s23 = sphi 0, %s27
      %p24 = scmp.ge.s32.totalorder %s23, 4
      %s30 = sphi 0, %s42
      %s31 = sphi 0, %s38
      %s32 = sphi 0, %s30
      %s33 = sphi 0, %s31
      %s34 = sphi 0, %s32
      %s35 = sphi 0, %s33
      %s51 = sphi 0, %s53
      %s54 = sphi 0, %s51
      %s55 = sphi 0, %s54
      %s71 = sphi 0, %s55
      %s83 = sphi 0, %s85
      %s86 = sphi 0, %s83
      %s87 = sphi 0, %s86
      %s103 = sphi 0, %s87
      %s109 = sphi 0, %s111
      %s112 = sphi 0, %s109
      %s113 = sphi 0, %s112
      %s129 = sphi 0, %s113
      %s135 = sphi 0, %s137
      %s138 = sphi 0, %s135
      %s139 = sphi 0, %s138
      %s155 = sphi 0, %s139
      %s161 = sphi 0, %s163
      %s164 = sphi 0, %s161
      %s165 = sphi 0, %s164
      %s181 = sphi 0, %s165
    $region4: #{tpu_custom_call.1} parent=1 // loop_header_branch
      %26 = sbr.rel (%p24) target = $region8
    $region5: #{tpu_custom_call.1} parent=1 // loop_body
      %s28 = ssub.s32 %s23, 1
      %s29 = ssub.s32 %s23, 2
      %s36 = sadd.s32 1, %s31
      %p37 = scmp.ge.s32.totalorder %s36, 1
      %s38 = scalar_select %p37, 0, %s36
      %s39 = sadd.s32 1, %s30
      %s40 = scalar_select %p37, %s39, %s30
      %p41 = scmp.ge.s32.totalorder %s40, 2
      %s42 = scalar_select %p41, 0, %s40
      %s43 = sadd.s32 %s30, %s31
      %p44 = scmp.lt.s32.totalorder %s43, 0
      %s45 = scalar_select %p44, %s43, 0
      %s46 = sadd.s32 %s42, %s38
      %p47 = scmp.lt.s32.totalorder %s46, 0
      %s48 = scalar_select %p47, %s46, 0
      %s49 = ssub.s32 %s45, %s48
      %p50 = scmp.eq.s32.totalorder %s49, 0
      %s52 = sadd.s32 %s51, 1
      %s53 = scalar_select %p50, %s51, %s52
      %p56 = pneg %p50
      %p57 = scmp.eq.s32.totalorder %s23, 1
      %p58 = por %p56, %p57
      %p59 = scmp.ne.s32.totalorder %s51, %s54
      %p60 = scmp.eq.s32.totalorder %s23, 0
      %p61 = por %p59, %p60
      %p62 = scmp.ne.s32.totalorder %s51, %s54
      %p63 = scmp.eq.s32.totalorder %s28, 1
      %p64 = por %p62, %p63
      %p65 = scmp.ne.s32.totalorder %s54, %s55
      %p66 = scmp.eq.s32.totalorder %s28, 0
      %p67 = por %p65, %p66
      %p68 = scmp.ne.s32.totalorder %s54, %s55
      %p69 = scmp.eq.s32.totalorder %s29, 1
      %p70 = por %p68, %p69
      %p72 = scmp.ne.s32.totalorder %s55, %s71
      %p73 = scmp.eq.s32.totalorder %s29, 0
      %p74 = por %p72, %p73
      %s75 = sadd.s32 %s30, %s31
      %p76 = scmp.lt.s32.totalorder %s75, 0
      %s77 = scalar_select %p76, %s75, 0
      %s78 = sadd.s32 %s42, %s38
      %p79 = scmp.lt.s32.totalorder %s78, 0
      %s80 = scalar_select %p79, %s78, 0
      %s81 = ssub.s32 %s77, %s80
      %p82 = scmp.eq.s32.totalorder %s81, 0
      %s84 = sadd.s32 %s83, 1
      %s85 = scalar_select %p82, %s83, %s84
      %p88 = pneg %p82
      %p89 = scmp.eq.s32.totalorder %s23, 1
      %p90 = por %p88, %p89
      %p91 = scmp.ne.s32.totalorder %s83, %s86
      %p92 = scmp.eq.s32.totalorder %s23, 0
      %p93 = por %p91, %p92
      %p94 = scmp.ne.s32.totalorder %s83, %s86
      %p95 = scmp.eq.s32.totalorder %s28, 1
      %p96 = por %p94, %p95
      %p97 = scmp.ne.s32.totalorder %s86, %s87
      %p98 = scmp.eq.s32.totalorder %s28, 0
      %p99 = por %p97, %p98
      %p100 = scmp.ne.s32.totalorder %s86, %s87
      %p101 = scmp.eq.s32.totalorder %s29, 1
      %p102 = por %p100, %p101
      %p104 = scmp.ne.s32.totalorder %s87, %s103
      %p105 = scmp.eq.s32.totalorder %s29, 0
      %p106 = por %p104, %p105
      %s107 = ssub.s32 %s30, %s42
      %p108 = scmp.eq.s32.totalorder %s107, 0
      %s110 = sadd.s32 %s109, 1
      %s111 = scalar_select %p108, %s109, %s110
      %p114 = pneg %p108
      %p115 = scmp.eq.s32.totalorder %s23, 1
      %p116 = por %p114, %p115
      %p117 = scmp.ne.s32.totalorder %s109, %s112
      %p118 = scmp.eq.s32.totalorder %s23, 0
      %p119 = por %p117, %p118
      %p120 = scmp.ne.s32.totalorder %s109, %s112
      %p121 = scmp.eq.s32.totalorder %s28, 1
      %p122 = por %p120, %p121
      %p123 = scmp.ne.s32.totalorder %s112, %s113
      %p124 = scmp.eq.s32.totalorder %s28, 0
      %p125 = por %p123, %p124
      %p126 = scmp.ne.s32.totalorder %s112, %s113
      %p127 = scmp.eq.s32.totalorder %s29, 1
      %p128 = por %p126, %p127
      %p130 = scmp.ne.s32.totalorder %s113, %s129
      %p131 = scmp.eq.s32.totalorder %s29, 0
      %p132 = por %p130, %p131
      %s133 = ssub.s32 %s30, %s42
      %p134 = scmp.eq.s32.totalorder %s133, 0
      %s136 = sadd.s32 %s135, 1
      %s137 = scalar_select %p134, %s135, %s136
      %p140 = pneg %p134
      %p141 = scmp.eq.s32.totalorder %s23, 1
      %p142 = por %p140, %p141
      %p143 = scmp.ne.s32.totalorder %s135, %s138
      %p144 = scmp.eq.s32.totalorder %s23, 0
      %p145 = por %p143, %p144
      %p146 = scmp.ne.s32.totalorder %s135, %s138
      %p147 = scmp.eq.s32.totalorder %s28, 1
      %p148 = por %p146, %p147
      %p149 = scmp.ne.s32.totalorder %s138, %s139
      %p150 = scmp.eq.s32.totalorder %s28, 0
      %p151 = por %p149, %p150
      %p152 = scmp.ne.s32.totalorder %s138, %s139
      %p153 = scmp.eq.s32.totalorder %s29, 1
      %p154 = por %p152, %p153
      %p156 = scmp.ne.s32.totalorder %s139, %s155
      %p157 = scmp.eq.s32.totalorder %s29, 0
      %p158 = por %p156, %p157
      %s159 = ssub.s32 %s30, %s42
      %p160 = scmp.eq.s32.totalorder %s159, 0
      %s162 = sadd.s32 %s161, 1
      %s163 = scalar_select %p160, %s161, %s162
      %p166 = pneg %p160
      %p167 = scmp.eq.s32.totalorder %s23, 1
      %p168 = por %p166, %p167
      %p169 = scmp.ne.s32.totalorder %s161, %s164
      %p170 = scmp.eq.s32.totalorder %s23, 0
      %p171 = por %p169, %p170
      %p172 = scmp.ne.s32.totalorder %s161, %s164
      %p173 = scmp.eq.s32.totalorder %s28, 1
      %p174 = por %p172, %p173
      %p175 = scmp.ne.s32.totalorder %s164, %s165
      %p176 = scmp.eq.s32.totalorder %s28, 0
      %p177 = por %p175, %p176
      %p178 = scmp.ne.s32.totalorder %s164, %s165
      %p179 = scmp.eq.s32.totalorder %s29, 1
      %p180 = por %p178, %p179
      %p182 = scmp.ne.s32.totalorder %s165, %s181
      %p183 = scmp.eq.s32.totalorder %s29, 0
      %p184 = por %p182, %p183
      %p185 = scmp.le.s32.totalorder 1, %s23
      %p186 = scmp.lt.s32.totalorder %s23, 3
      %p187 = pnand %p185, %p186
      %p188 = pneg %p187
      // Predicated region
      $region9: #{tpu_custom_call.1} parent=5 // pred_check
        _
      $region10: #{tpu_custom_call.1} parent=5 // pred_check_branch
        %190 = sbr.rel (%p187) target = $region12
      $region11: #{tpu_custom_call.1} parent=5 // pred_region
        %s191 = ssub.s32 %s23, 1
      $region12: #{tpu_custom_call.1} parent=5 // pred_fallthru
        _
      %p192 = scmp.lt.s32.totalorder %s23, 2
      // Predicated region
      $region13: #{tpu_custom_call.1} parent=5 // pred_check
        %p193 = pneg %p192
      $region14: #{tpu_custom_call.1} parent=5 // pred_check_branch
        %195 = sbr.rel (%p193) target = $region16
      $region15: #{tpu_custom_call.1} parent=5 // pred_region
        // Predicated region
        $region17: #{tpu_custom_call.1} parent=15 // pred_check
          %p196 = pneg %p61
        $region18: #{tpu_custom_call.1} parent=15 // pred_check_branch
          %198 = sbr.rel (%p196) target = $region20
        $region19: #{tpu_custom_call.1} parent=15 // pred_region
          %s199 = sand.u32 %s51, 1
          %s200 = scalar_lea.sflag [#allocation3], %s199
          %s201 = sand.u32 %s51, 1
          %s202 = smul.addr %s201, 32
          %s203 = scalar_lea.vmem [#allocation2], %s202
          %s204 = sadd.s32 %s30, %s31
          %p205 = scmp.lt.s32.totalorder %s204, 0
          %s206 = scalar_select %p205, %s204, 0
          %s207 = smul.u32 4, %s206
          %s209 = ssub.s32 512, 512
          %210 = vsyncadd %s200, %s209
          %s211 = smul.addr %s207, 64
          %s212 = scalar_lea.hbm %s0, %s211
          %s213 = sshll.u32 %s203, 4
          %s214 = int_to_ptr.vmem [resolvable:$true] %s213
          %219 = dma.hbm_to_vmem [thread:$0]  %s212, 512, %s214, %s200, 256, 256, 16
        $region20: #{tpu_custom_call.1} parent=15 // pred_fallthru
          _
        // Predicated region
        $region21: #{tpu_custom_call.1} parent=15 // pred_check
          %p220 = pneg %p93
        $region22: #{tpu_custom_call.1} parent=15 // pred_check_branch
          %222 = sbr.rel (%p220) target = $region24
        $region23: #{tpu_custom_call.1} parent=15 // pred_region
          %s223 = sand.u32 %s83, 1
          %s224 = scalar_lea.sflag [#allocation6], %s223
          %s225 = sand.u32 %s83, 1
          %s226 = smul.addr %s225, 8
          %s227 = scalar_lea.vmem [#allocation5], %s226
          %s228 = sadd.s32 %s30, %s31
          %p229 = scmp.lt.s32.totalorder %s228, 0
          %s230 = scalar_select %p229, %s228, 0
          %s231 = smul.u32 4, %s230
          %s233 = ssub.s32 128, 128
          %234 = vsyncadd %s224, %s233
          %s235 = smul.addr %s231, 32
          %s236 = scalar_lea.hbm %s1, %s235
          %s238 = sshll.u32 %s227, 4
          %s239 = int_to_ptr.vmem [resolvable:$true] %s238
          %241 = dma.hbm_to_vmem [thread:$0]  %s236, 128, %s239, %s224
        $region24: #{tpu_custom_call.1} parent=15 // pred_fallthru
          _
      $region16: #{tpu_custom_call.1} parent=5 // pred_fallthru
        _
      %p242 = scmp.le.s32.totalorder 1, %s23
      %p243 = scmp.lt.s32.totalorder %s23, 3
      %p244 = pnand %p242, %p243
      %p245 = pneg %p244
      // Predicated region
      $region25: #{tpu_custom_call.1} parent=5 // pred_check
        _
      $region26: #{tpu_custom_call.1} parent=5 // pred_check_branch
        %247 = sbr.rel (%p244) target = $region28
      $region27: #{tpu_custom_call.1} parent=5 // pred_region
        %s248 = ssub.s32 %s23, 1
        %s249 = sand.u32 %s54, 1
        %s250 = scalar_lea.sflag [#allocation3], %s249
        %s251 = sand.u32 %s54, 1
        %s252 = smul.addr %s251, 32
        %s253 = scalar_lea.vmem [#allocation2], %s252
        // Predicated region
        $region29: #{tpu_custom_call.1} parent=27 // pred_check
          %p254 = pneg %p67
        $region30: #{tpu_custom_call.1} parent=27 // pred_check_branch
          %256 = sbr.rel (%p254) target = $region32
        $region31: #{tpu_custom_call.1} parent=27 // pred_region
          %257 = dma.done %s250, 512
        $region32: #{tpu_custom_call.1} parent=27 // pred_fallthru
          _
        %s258 = sand.u32 %s86, 1
        %s259 = scalar_lea.sflag [#allocation6], %s258
        %s260 = sand.u32 %s86, 1
        %s261 = smul.addr %s260, 8
        %s262 = scalar_lea.vmem [#allocation5], %s261
        // Predicated region
        $region33: #{tpu_custom_call.1} parent=27 // pred_check
          %p263 = pneg %p99
        $region34: #{tpu_custom_call.1} parent=27 // pred_check_branch
          %265 = sbr.rel (%p263) target = $region36
        $region35: #{tpu_custom_call.1} parent=27 // pred_region
          %266 = dma.done %s259, 128
        $region36: #{tpu_custom_call.1} parent=27 // pred_fallthru
          _
        %s267 = sand.u32 %s54, 1
        %s268 = scalar_lea.sflag [#allocation3], %s267
        %s269 = sand.u32 %s54, 1
        %s270 = smul.addr %s269, 32
        %s271 = scalar_lea.vmem [#allocation2], %s270
        %p272 = pneg %p67
        %p273 = pneg %p64
        %s274 = sand.u32 %s86, 1
        %s275 = scalar_lea.sflag [#allocation6], %s274
        %s276 = sand.u32 %s86, 1
        %s277 = smul.addr %s276, 8
        %s278 = scalar_lea.vmem [#allocation5], %s277
        %p279 = pneg %p99
        %p280 = pneg %p96
        %p281 = pneg %p125
        %p282 = pneg %p122
        %s283 = sand.u32 %s112, 1
        %s284 = scalar_lea.sflag [#allocation4], %s283
        %s285 = sand.u32 %s112, 1
        %s286 = smul.addr %s285, 8
        %s287 = scalar_lea.vmem [#allocation7], %s286
        %p288 = pneg %p151
        %p289 = pneg %p148
        %s290 = sand.u32 %s28, 1
        %s291 = scalar_lea.sflag [#allocation9], %s290
        %s292 = sand.u32 %s138, 1
        %s293 = smul.addr %s292, 8
        %s294 = scalar_lea.vmem [#allocation8], %s293
        %p295 = pneg %p177
        %p296 = pneg %p174
        %s297 = sand.u32 %s28, 1
        %s298 = scalar_lea.sflag [#allocation9], %s297
        %s299 = sand.u32 %s164, 1
        %s300 = smul.addr %s299, 8
        %s301 = scalar_lea.vmem [#allocation10], %s300
        %s302 = sadd.s32 %s32, %s33
        %p303 = scmp.lt.s32.totalorder %s302, 0
        %s304 = scalar_select %p303, %s302, 0
        %s305 = smul.u32 4, %s304
        %s306 = sadd.s32 %s32, %s33
        %p307 = scmp.lt.s32.totalorder %s306, 0
        %s308 = scalar_select %p307, %s306, 0
        %s309 = smul.u32 4, %s308
        %s310 = sadd.s32 %s32, %s33
        %p311 = scmp.eq.s32.totalorder %s33, 0
        // Predicated region
        $region37: #{tpu_custom_call.1} parent=27 // pred_check
          %p312 = pneg %p311
        $region38: #{tpu_custom_call.1} parent=27 // pred_check_branch
          %314 = sbr.rel (%p312) target = $region40
        $region39: #{tpu_custom_call.1} parent=27 // pred_region
          %315 = vst [vmem:[%s287] sm:$0xf] 0.0
          %316 = vst [vmem:[%s287 + $0x4] sm:$0xf] 0.0
          %317 = vst [vmem:[%s294] sm:$0xf] 0.0
          %318 = vst [vmem:[%s294 + $0x4] sm:$0xf] 0.0
          %319 = vst [vmem:[%s301] sm:$0xf] 0.0
          %320 = vst [vmem:[%s301 + $0x4] sm:$0xf] 0.0
        $region40: #{tpu_custom_call.1} parent=27 // pred_fallthru
          _
        %p321 = scmp.le.s32.totalorder %s310, 0
        // Predicated region
        $region41: #{tpu_custom_call.1} parent=27 // pred_check
          %p322 = pneg %p321
        $region42: #{tpu_custom_call.1} parent=27 // pred_check_branch
          %324 = sbr.rel (%p322) target = $region44
        $region43: #{tpu_custom_call.1} parent=27 // pred_region
          %v325 = vld [vmem:[%s253] sm:$0xff]
          %v326 = vld [vmem:[%s253 + $0x8] sm:$0xff]
          %v327 = vld [vmem:[%s253 + $0x10] sm:$0xff]
          %v328 = vld [vmem:[%s253 + $0x18] sm:$0xff]
          %v329 = vld [vmem:[%s262] sm:$0xff]
          %v334 = vcombine.high %v325, %v325
          %v335 = vcombine.high %v326, %v326
          %v336 = vcombine.high %v327, %v327
          %v337 = vcombine.high %v328, %v328
          %vm342 = vcmask 1043456
          %v343 = vsel %vm342, %v325, -inf
          %v344 = vrot.slane %v343, 4
          %v345 = vmax.f32 %v343, %v344
          %v346 = vrot.slane %v345, 2
          %v347 = vmax.f32 %v345, %v346
          %v348 = vrot.slane %v347, 1
          %v349 = vmax.f32 %v347, %v348
          %v350 = vsel %vm342, %v334, -inf
          %v351 = vrot.slane %v350, 4
          %v352 = vmax.f32 %v350, %v351
          %v353 = vrot.slane %v352, 2
          %v354 = vmax.f32 %v352, %v353
          %v355 = vrot.slane %v354, 1
          %v356 = vmax.f32 %v354, %v355
          %v357 = vsel %vm342, %v326, -inf
          %v358 = vrot.slane %v357, 4
          %v359 = vmax.f32 %v357, %v358
          %v360 = vrot.slane %v359, 2
          %v361 = vmax.f32 %v359, %v360
          %v362 = vrot.slane %v361, 1
          %v363 = vmax.f32 %v361, %v362
          %v364 = vsel %vm342, %v335, -inf
          %v365 = vrot.slane %v364, 4
          %v366 = vmax.f32 %v364, %v365
          %v367 = vrot.slane %v366, 2
          %v368 = vmax.f32 %v366, %v367
          %v369 = vrot.slane %v368, 1
          %v370 = vmax.f32 %v368, %v369
          %v371 = vsel %vm342, %v327, -inf
          %v372 = vrot.slane %v371, 4
          %v373 = vmax.f32 %v371, %v372
          %v374 = vrot.slane %v373, 2
          %v375 = vmax.f32 %v373, %v374
          %v376 = vrot.slane %v375, 1
          %v377 = vmax.f32 %v375, %v376
          %v378 = vsel %vm342, %v336, -inf
          %v379 = vrot.slane %v378, 4
          %v380 = vmax.f32 %v378, %v379
          %v381 = vrot.slane %v380, 2
          %v382 = vmax.f32 %v380, %v381
          %v383 = vrot.slane %v382, 1
          %v384 = vmax.f32 %v382, %v383
          %v385 = vsel %vm342, %v328, -inf
          %v386 = vrot.slane %v385, 4
          %v387 = vmax.f32 %v385, %v386
          %v388 = vrot.slane %v387, 2
          %v389 = vmax.f32 %v387, %v388
          %v390 = vrot.slane %v389, 1
          %v391 = vmax.f32 %v389, %v390
          %v392 = vsel %vm342, %v337, -inf
          %v393 = vrot.slane %v392, 4
          %v394 = vmax.f32 %v392, %v393
          %v395 = vrot.slane %v394, 2
          %v396 = vmax.f32 %v394, %v395
          %v397 = vrot.slane %v396, 1
          %v398 = vmax.f32 %v396, %v397
          %v407 = vcombine.low %v349, %v356
          %v408 = vcombine.low %v363, %v370
          %v409 = vcombine.low %v377, %v384
          %v410 = vcombine.low %v391, %v398
          %v415 = vsub.f32 %v325, %v407
          %v416 = vsub.f32 %v326, %v408
          %v417 = vsub.f32 %v327, %v409
          %v418 = vsub.f32 %v328, %v410
          %v419 = vmul.f32 %v415, 1.442695
          %v420 = vpow.pop %v419
          %v421 = vmul.f32 %v416, 1.442695
          %v422 = vpow.pop %v421
          %v423 = vmul.f32 %v417, 1.442695
          %v424 = vpow.pop %v423
          %v425 = vmul.f32 %v418, 1.442695
          %v426 = vpow.pop %v425
          %v431 = vcombine.high %v420, %v420
          %v432 = vcombine.high %v422, %v422
          %v433 = vcombine.high %v424, %v424
          %v434 = vcombine.high %v426, %v426
          %v439 = vsel %vm342, %v420, 0.0
          %v440 = vrot.slane %v439, 4
          %v441 = vadd.f32 %v439, %v440
          %v442 = vrot.slane %v441, 2
          %v443 = vadd.f32 %v441, %v442
          %v444 = vrot.slane %v443, 1
          %v445 = vadd.f32 %v443, %v444
          %v446 = vsel %vm342, %v431, 0.0
          %v447 = vrot.slane %v446, 4
          %v448 = vadd.f32 %v446, %v447
          %v449 = vrot.slane %v448, 2
          %v450 = vadd.f32 %v448, %v449
          %v451 = vrot.slane %v450, 1
          %v452 = vadd.f32 %v450, %v451
          %v453 = vsel %vm342, %v422, 0.0
          %v454 = vrot.slane %v453, 4
          %v455 = vadd.f32 %v453, %v454
          %v456 = vrot.slane %v455, 2
          %v457 = vadd.f32 %v455, %v456
          %v458 = vrot.slane %v457, 1
          %v459 = vadd.f32 %v457, %v458
          %v460 = vsel %vm342, %v432, 0.0
          %v461 = vrot.slane %v460, 4
          %v462 = vadd.f32 %v460, %v461
          %v463 = vrot.slane %v462, 2
          %v464 = vadd.f32 %v462, %v463
          %v465 = vrot.slane %v464, 1
          %v466 = vadd.f32 %v464, %v465
          %v467 = vsel %vm342, %v424, 0.0
          %v468 = vrot.slane %v467, 4
          %v469 = vadd.f32 %v467, %v468
          %v470 = vrot.slane %v469, 2
          %v471 = vadd.f32 %v469, %v470
          %v472 = vrot.slane %v471, 1
          %v473 = vadd.f32 %v471, %v472
          %v474 = vsel %vm342, %v433, 0.0
          %v475 = vrot.slane %v474, 4
          %v476 = vadd.f32 %v474, %v475
          %v477 = vrot.slane %v476, 2
          %v478 = vadd.f32 %v476, %v477
          %v479 = vrot.slane %v478, 1
          %v480 = vadd.f32 %v478, %v479
          %v481 = vsel %vm342, %v426, 0.0
          %v482 = vrot.slane %v481, 4
          %v483 = vadd.f32 %v481, %v482
          %v484 = vrot.slane %v483, 2
          %v485 = vadd.f32 %v483, %v484
          %v486 = vrot.slane %v485, 1
          %v487 = vadd.f32 %v485, %v486
          %v488 = vsel %vm342, %v434, 0.0
          %v489 = vrot.slane %v488, 4
          %v490 = vadd.f32 %v488, %v489
          %v491 = vrot.slane %v490, 2
          %v492 = vadd.f32 %v490, %v491
          %v493 = vrot.slane %v492, 1
          %v494 = vadd.f32 %v492, %v493
          %v495 = vrcp.pop %v445
          %v496 = vrcp.pop %v452
          %v497 = vrcp.pop %v459
          %v498 = vrcp.pop %v466
          %v499 = vrcp.pop %v473
          %v500 = vrcp.pop %v480
          %v501 = vrcp.pop %v487
          %v502 = vrcp.pop %v494
          %v511 = vcombine.low %v495, %v496
          %v512 = vcombine.low %v497, %v498
          %v513 = vcombine.low %v499, %v500
          %v514 = vcombine.low %v501, %v502
          %v519 = vmul.f32 %v420, %v511
          %v520 = vmul.f32 %v422, %v512
          %v521 = vmul.f32 %v424, %v513
          %v522 = vmul.f32 %v426, %v514
          %v523 = vlaneseq
          %v524 = vshrl.u32 %v523, 7
          %v525 = vld [vmem:[%s287] sm:$0xf]
          %v526 = vld [vmem:[%s287 + $0x4] sm:$0xf]
          %v527 = vld [vmem:[%s294] sm:$0xf]
          %v528 = vld [vmem:[%s294 + $0x4] sm:$0xf]
          %v529 = vld [vmem:[%s301] sm:$0xf]
          %v530 = vld [vmem:[%s301 + $0x4] sm:$0xf]
          %v532 = vunpack.c.l.s4 1966171168
          %v533 = vunpack.c.0.s8 %v532
          %v534 = vlaneseq
          %v535 = vshrl.u32 %v534, 7
          %v536 = vsub.s32 %v533, %v535
          %v537 = vrot.slane %v329, %v536
          %v538 = vcombine.high %v537, %v537
          %v539 = vlaneseq
          %v540 = vshrl.u32 %v539, 7
          %v541 = vsub.s32 0, %v540
          %v542 = vrot.slane %v537, %v541
          %v543 = vlaneseq
          %v544 = vshrl.u32 %v543, 7
          %v545 = vsub.s32 0, %v544
          %v546 = vrot.slane %v538, %v545
          %vm547 = vcmp.eq.s32.totalorder %v524, %v542
          %vm548 = vcmp.eq.s32.totalorder %v524, %v546
          %v549 = vsel %vm547, 1.0, 0.0
          %v550 = vsel %vm548, 1.0, 0.0
          %v551 = vmul.f32 %v519, %v549
          %v552 = vmul.f32 %v521, %v550
          %v553 = vadd.f32 %v525, %v551
          %v554 = vadd.f32 %v526, %v552
          %v555 = vadd.f32 %v527, %v519
          %v556 = vadd.f32 %v528, %v521
          %v557 = vadd.f32 %v529, %v549
          %v558 = vadd.f32 %v530, %v550
          %v559 = vrot.slane %v537, 1
          %v560 = vrot.slane %v538, 1
          %v561 = vlaneseq
          %v562 = vshrl.u32 %v561, 7
          %v563 = vsub.s32 0, %v562
          %v564 = vrot.slane %v559, %v563
          %v565 = vlaneseq
          %v566 = vshrl.u32 %v565, 7
          %v567 = vsub.s32 0, %v566
          %v568 = vrot.slane %v560, %v567
          %vm569 = vcmp.eq.s32.totalorder %v524, %v564
          %vm570 = vcmp.eq.s32.totalorder %v524, %v568
          %v571 = vsel %vm569, 1.0, 0.0
          %v572 = vsel %vm570, 1.0, 0.0
          %v575 = vrot.slane %v519, 4
          %v576 = vrot.slane %v521, 4
          %v579 = vmul.f32 %v575, %v571
          %v580 = vmul.f32 %v576, %v572
          %v581 = vadd.f32 %v553, %v579
          %v582 = vadd.f32 %v554, %v580
          %v583 = vcombine.high %v519, %v519
          %v584 = vcombine.high %v521, %v521
          %v587 = vadd.f32 %v555, %v583
          %v588 = vadd.f32 %v556, %v584
          %v589 = vadd.f32 %v557, %v571
          %v590 = vadd.f32 %v558, %v572
          %v591 = vrot.slane %v537, 2
          %v592 = vrot.slane %v538, 2
          %v593 = vlaneseq
          %v594 = vshrl.u32 %v593, 7
          %v595 = vsub.s32 0, %v594
          %v596 = vrot.slane %v591, %v595
          %v597 = vlaneseq
          %v598 = vshrl.u32 %v597, 7
          %v599 = vsub.s32 0, %v598
          %v600 = vrot.slane %v592, %v599
          %vm601 = vcmp.eq.s32.totalorder %v524, %v596
          %vm602 = vcmp.eq.s32.totalorder %v524, %v600
          %v603 = vsel %vm601, 1.0, 0.0
          %v604 = vsel %vm602, 1.0, 0.0
          %v605 = vmul.f32 %v520, %v603
          %v606 = vmul.f32 %v522, %v604
          %v607 = vadd.f32 %v581, %v605
          %v608 = vadd.f32 %v582, %v606
          %v609 = vadd.f32 %v587, %v520
          %v610 = vadd.f32 %v588, %v522
          %v611 = vadd.f32 %v589, %v603
          %v612 = vadd.f32 %v590, %v604
          %v613 = vrot.slane %v537, 3
          %v614 = vrot.slane %v538, 3
          %v615 = vlaneseq
          %v616 = vshrl.u32 %v615, 7
          %v617 = vsub.s32 0, %v616
          %v618 = vrot.slane %v613, %v617
          %v619 = vlaneseq
          %v620 = vshrl.u32 %v619, 7
          %v621 = vsub.s32 0, %v620
          %v622 = vrot.slane %v614, %v621
          %vm623 = vcmp.eq.s32.totalorder %v524, %v618
          %vm624 = vcmp.eq.s32.totalorder %v524, %v622
          %v625 = vsel %vm623, 1.0, 0.0
          %v626 = vsel %vm624, 1.0, 0.0
          %v629 = vrot.slane %v520, 4
          %v630 = vrot.slane %v522, 4
          %v633 = vmul.f32 %v629, %v625
          %v634 = vmul.f32 %v630, %v626
          %v635 = vadd.f32 %v607, %v633
          %v636 = vadd.f32 %v608, %v634
          %v637 = vcombine.high %v520, %v520
          %v638 = vcombine.high %v522, %v522
          %v641 = vadd.f32 %v609, %v637
          %v642 = vadd.f32 %v610, %v638
          %v643 = vadd.f32 %v611, %v625
          %v644 = vadd.f32 %v612, %v626
          %645 = vst [vmem:[%s287] sm:$0xf] %v635
          %646 = vst [vmem:[%s287 + $0x4] sm:$0xf] %v636
          %647 = vst [vmem:[%s294] sm:$0xf] %v641
          %648 = vst [vmem:[%s294 + $0x4] sm:$0xf] %v642
          %649 = vst [vmem:[%s301] sm:$0xf] %v643
          %650 = vst [vmem:[%s301 + $0x4] sm:$0xf] %v644
        $region44: #{tpu_custom_call.1} parent=27 // pred_fallthru
          _
        %s651 = sand.u32 %s112, 1
        %s652 = scalar_lea.sflag [#allocation4], %s651
        %s653 = sand.u32 %s112, 1
        %s654 = smul.addr %s653, 8
        %s655 = scalar_lea.vmem [#allocation7], %s654
        %s656 = sand.u32 %s28, 1
        %s657 = scalar_lea.sflag [#allocation9], %s656
        %s658 = sand.u32 %s138, 1
        %s659 = smul.addr %s658, 8
        %s660 = scalar_lea.vmem [#allocation8], %s659
        %s661 = sand.u32 %s28, 1
        %s662 = scalar_lea.sflag [#allocation9], %s661
        %s663 = sand.u32 %s164, 1
        %s664 = smul.addr %s663, 8
        %s665 = scalar_lea.vmem [#allocation10], %s664
        // Predicated region
        $region45: #{tpu_custom_call.1} parent=27 // pred_check
          %p666 = pneg %p122
        $region46: #{tpu_custom_call.1} parent=27 // pred_check_branch
          %668 = sbr.rel (%p666) target = $region48
        $region47: #{tpu_custom_call.1} parent=27 // pred_region
          %s670 = ssub.s32 128, 128
          %671 = vsyncadd %s652, %s670
          %s672 = smul.addr %s32, 2
          %s673 = smul.addr %s672, 64
          %s674 = scalar_lea.hbm %s2, %s673
          %s675 = sshll.u32 %s655, 4
          %s676 = int_to_ptr.vmem [resolvable:$true] %s675
          %681 = dma.vmem_to_hbm [thread:$0]  %s676, 128, %s674, %s652, 64, 64, 4
        $region48: #{tpu_custom_call.1} parent=27 // pred_fallthru
          _
        // Predicated region
        $region49: #{tpu_custom_call.1} parent=27 // pred_check
          %p682 = pneg %p148
        $region50: #{tpu_custom_call.1} parent=27 // pred_check_branch
          %684 = sbr.rel (%p682) target = $region52
        $region51: #{tpu_custom_call.1} parent=27 // pred_region
          %s686 = ssub.s32 128, 128
          %687 = vsyncadd %s657, %s686
          %s688 = smul.addr %s32, 2
          %s689 = smul.addr %s688, 64
          %s690 = scalar_lea.hbm %s3, %s689
          %s691 = sshll.u32 %s660, 4
          %s692 = int_to_ptr.vmem [resolvable:$true] %s691
          %697 = dma.vmem_to_hbm [thread:$0]  %s692, 128, %s690, %s657, 64, 64, 4
        $region52: #{tpu_custom_call.1} parent=27 // pred_fallthru
          _
        // Predicated region
        $region53: #{tpu_custom_call.1} parent=27 // pred_check
          %p698 = pneg %p174
        $region54: #{tpu_custom_call.1} parent=27 // pred_check_branch
          %700 = sbr.rel (%p698) target = $region56
        $region55: #{tpu_custom_call.1} parent=27 // pred_region
          %s702 = ssub.s32 128, 128
          %703 = vsyncadd %s662, %s702
          %s704 = smul.addr %s32, 2
          %s705 = smul.addr %s704, 64
          %s706 = scalar_lea.hbm %s4, %s705
          %s707 = sshll.u32 %s665, 4
          %s708 = int_to_ptr.vmem [resolvable:$true] %s707
          %713 = dma.vmem_to_hbm [thread:$0]  %s708, 128, %s706, %s662, 64, 64, 4
        $region56: #{tpu_custom_call.1} parent=27 // pred_fallthru
          _
      $region28: #{tpu_custom_call.1} parent=5 // pred_fallthru
        _
      %p714 = scmp.le.s32.totalorder 2, %s23
      // Predicated region
      $region57: #{tpu_custom_call.1} parent=5 // pred_check
        %p715 = pneg %p714
      $region58: #{tpu_custom_call.1} parent=5 // pred_check_branch
        %717 = sbr.rel (%p715) target = $region60
      $region59: #{tpu_custom_call.1} parent=5 // pred_region
        %s718 = ssub.s32 %s23, 2
        // Predicated region
        $region61: #{tpu_custom_call.1} parent=59 // pred_check
          %p719 = pneg %p128
        $region62: #{tpu_custom_call.1} parent=59 // pred_check_branch
          %721 = sbr.rel (%p719) target = $region64
        $region63: #{tpu_custom_call.1} parent=59 // pred_region
          %s722 = sand.u32 %s113, 1
          %s723 = scalar_lea.sflag [#allocation4], %s722
          %s724 = sand.u32 %s113, 1
          %s725 = smul.addr %s724, 8
          %s726 = scalar_lea.vmem [#allocation7], %s725
          %727 = dma.done %s723, 128
        $region64: #{tpu_custom_call.1} parent=59 // pred_fallthru
          _
        // Predicated region
        $region65: #{tpu_custom_call.1} parent=59 // pred_check
          %p728 = pneg %p154
        $region66: #{tpu_custom_call.1} parent=59 // pred_check_branch
          %730 = sbr.rel (%p728) target = $region68
        $region67: #{tpu_custom_call.1} parent=59 // pred_region
          %s731 = sand.u32 %s29, 1
          %s732 = scalar_lea.sflag [#allocation9], %s731
          %s733 = sand.u32 %s139, 1
          %s734 = smul.addr %s733, 8
          %s735 = scalar_lea.vmem [#allocation8], %s734
          %736 = dma.done %s732, 128
        $region68: #{tpu_custom_call.1} parent=59 // pred_fallthru
          _
        // Predicated region
        $region69: #{tpu_custom_call.1} parent=59 // pred_check
          %p737 = pneg %p180
        $region70: #{tpu_custom_call.1} parent=59 // pred_check_branch
          %739 = sbr.rel (%p737) target = $region72
        $region71: #{tpu_custom_call.1} parent=59 // pred_region
          %s740 = sand.u32 %s29, 1
          %s741 = scalar_lea.sflag [#allocation9], %s740
          %s742 = sand.u32 %s165, 1
          %s743 = smul.addr %s742, 8
          %s744 = scalar_lea.vmem [#allocation10], %s743
          %745 = dma.done %s741, 128
        $region72: #{tpu_custom_call.1} parent=59 // pred_fallthru
          _
      $region60: #{tpu_custom_call.1} parent=5 // pred_fallthru
        _
    $region6: #{tpu_custom_call.1} parent=1 // loop_footer
      %s27 = sadd.s32 1, %s23
    $region7: #{tpu_custom_call.1} parent=1 // loop_footer_branch
      %22 = sbr.rel target = $region3
    $region8: #{tpu_custom_call.1} parent=1 // loop_exit
      _
    %746 = vsyncpa [#allocation3], 1
    %s747 = scalar_lea.sflag [#allocation3], 1
    %748 = vsyncpa %s747, 1
    %749 = vsyncpa [#allocation6], 1
    %s750 = scalar_lea.sflag [#allocation6], 1
    %751 = vsyncpa %s750, 1
    %752 = vsyncpa [#allocation4], 1
    %s753 = scalar_lea.sflag [#allocation4], 1
    %754 = vsyncpa %s753, 1
    %755 = vsyncpa [#allocation9], 1
    %s756 = scalar_lea.sflag [#allocation9], 1
    %757 = vsyncpa %s756, 1

</llo_original>
